<compile_context>
chip_gen: v5e
topology: v5e:2x2
jax: 0.10.0
libtpu: 0.0.40
codegen_flags: <defaults>
</compile_context>

<pallas_src>
import functools

import jax
import jax.numpy as jnp
from jax import lax
from jax.experimental import pallas as pl
from jax.experimental.pallas import tpu as pltpu


_IN = 9          # input features (kept unpadded; K=9 is handled by the MXU)
_H64_PAD = 128   # 64-wide hidden layers zero-padded to 128
_H256 = 256


def _round_up(x, m):
    return (x + m - 1) // m * m


def _mlp_kernel(x_ref,
                w1t_ref, b1_ref,
                w2_ref,
                w3_ref, b3_ref,
                w4c_ref, b4_ref,
                o_ref):
    """Fused forward pass for one batch tile.

    x_ref  : (TB, 9)   f32  batch-major input tile (cast to bf16 in-kernel)
    w1t_ref: (9, 128)  bf16 layer-1 weights, (in, out) orientation, out padded
    b1_ref : (1, 128)  f32  layer-1 bias row; slot 64 = 1.0 (carrier for b2)
    w2_ref : (256,128) bf16 layer-2 weights (out, in); column 64 holds b2
    w3_ref : (128,256) bf16 layer-3 weights (out, in), out padded
    b3_ref : (128, 1)  f32  layer-3 bias column, padded
    w4c_ref: (128, 1)  f32  layer-4 weights as a column (VPU path)
    b4_ref : (1,)      f32  layer-4 bias, SMEM scalar
    o_ref  : (1, TB)   f32  lane-dense output row
    """
    x = x_ref[...].astype(jnp.bfloat16)                                  # (TB, 9)

    # Layer 1, batch-major: (TB, 9) @ (9, 128) -> (TB, 128).
    h1 = jnp.dot(x, w1t_ref[...], preferred_element_type=jnp.float32)
    # b1_pad[64] = 1.0 turns padded column 64 into a constant-1 carrier.
    h1 = jnp.maximum(h1 + b1_ref[...], 0.0).astype(jnp.bfloat16)         # (TB, 128)

    # Layer 2, switch to feature-major via transposed-RHS dot (aligned K=128):
    # (256, 128) x (TB, 128)^T -> (256, TB); w2[:, 64]=b2 rides the carrier.
    h2 = lax.dot_general(w2_ref[...], h1,
                         dimension_numbers=(((1,), (1,)), ((), ())),
                         preferred_element_type=jnp.float32)
    h2 = jnp.maximum(h2, 0.0).astype(jnp.bfloat16)                       # (256, TB)

    # Layer 3, feature-major: (128, 256) @ (256, TB) -> (128, TB).
    h3 = jnp.dot(w3_ref[...], h2, preferred_element_type=jnp.float32)
    h3 = jnp.maximum(h3 + b3_ref[...], 0.0)                              # f32

    # Layer 4: single output row -> VPU multiply + sublane sum (MXU M=1 wasted).
    out = jnp.sum(w4c_ref[...] * h3, axis=0, keepdims=True)              # (1, TB)
    o_ref[...] = (out + b4_ref[0]).astype(o_ref.dtype)


def pack_params(params):
    """Pad/cast PyTorch-layout params into the kernel's layout.

    PyTorch nn.Linear stores W as (out, in).  64-wide dims are zero-padded to
    128.  Matmul operands are bf16; biases stay f32.  b2 is folded into w2's
    padded column 64 (its constant-1 carrier is created by b1_pad[64] = 1.0).
    """
    w1, b1 = params["w1"], params["b1"]     # (64, 9),   (64,)
    w2, b2 = params["w2"], params["b2"]     # (256, 64), (256,)
    w3, b3 = params["w3"], params["b3"]     # (64, 256), (64,)
    w4, b4 = params["w4"], params["b4"]     # (1, 64),   (1,)

    # Layer 1 runs batch-major: x (TB,9) @ w1t (9,128).
    w1t = jnp.zeros((_IN, _H64_PAD), jnp.float32).at[:, :64].set(w1.T)
    b1r = (jnp.zeros((1, _H64_PAD), jnp.float32)
           .at[0, :64].set(b1)
           .at[0, 64].set(1.0))             # constant-1 carrier for b2

    # Layer 2, feature-major (out=256, in=128); column 64 carries b2.
    w2p = (jnp.zeros((_H256, _H64_PAD), jnp.float32)
           .at[:, :64].set(w2)
           .at[:, 64].set(b2))

    # Layer 3, feature-major (out 64 -> 128 padded, in 256).
    w3p = jnp.zeros((_H64_PAD, _H256), jnp.float32).at[:64, :].set(w3)
    b3c = jnp.zeros((_H64_PAD, 1), jnp.float32).at[:64, 0].set(b3)

    # Layer 4 as a (128, 1) f32 column for the VPU/XLU reduction.
    w4c = jnp.zeros((_H64_PAD, 1), jnp.float32).at[:64, 0].set(w4[0])

    return {
        "w1t": w1t.astype(jnp.bfloat16),    # (9, 128)
        "b1": b1r,                          # (1, 128) f32
        "w2": w2p.astype(jnp.bfloat16),     # (256, 128), b2 folded in
        "w3": w3p.astype(jnp.bfloat16),     # (128, 256)
        "b3": b3c,                          # (128, 1) f32
        "w4c": w4c,                         # (128, 1) f32
        "b4": b4.astype(jnp.float32),       # (1,) -> SMEM scalar
    }


@functools.partial(jax.jit, static_argnames=("tb",))
def simple_conv_net_forward(x, packed, *, tb=2048):
    """x: (B, 9) float32.  packed: output of pack_params.  Returns (B, 1) f32."""
    B = x.shape[0]

    # Validate/round the tile: >=128, multiple of 128, <=4096 (v7x VMEM-safe).
    tb = _round_up(max(128, min(int(tb), 4096)), 128)
    if B >= 256:
        # Prefer >=2 grid steps so both v7x TensorCores get work.
        tb = min(tb, _round_up((B + 1) // 2, 128))
    tb = min(tb, _round_up(B, 128))          # don't oversize tiny batches
    b_pad = _round_up(B, tb)
    grid = (b_pad // tb,)

    # Only batch-dim zero padding (no transpose, no cast, no feature pad).
    xp = x if b_pad == B else jnp.pad(x, ((0, b_pad - B), (0, 0)))

    const = lambda i: (0, 0)                 # weights/biases: VMEM-resident
    out = pl.pallas_call(
        _mlp_kernel,
        out_shape=jax.ShapeDtypeStruct((1, b_pad), jnp.float32),
        grid=grid,
        in_specs=[
            pl.BlockSpec((tb, _IN), lambda i: (i, 0)),           # x tile
            pl.BlockSpec((_IN, _H64_PAD), const),                # w1t
            pl.BlockSpec((1, _H64_PAD), const),                  # b1 (+carrier)
            pl.BlockSpec((_H256, _H64_PAD), const),              # w2 (b2 folded)
            pl.BlockSpec((_H64_PAD, _H256), const),              # w3
            pl.BlockSpec((_H64_PAD, 1), const),                  # b3
            pl.BlockSpec((_H64_PAD, 1), const),                  # w4 column
            pl.BlockSpec(memory_space=pltpu.MemorySpace.SMEM),   # b4 scalar
        ],
        out_specs=pl.BlockSpec((1, tb), lambda i: (0, i)),       # lane-dense out
        compiler_params=pltpu.CompilerParams(
            dimension_semantics=("parallel",),
            vmem_limit_bytes=32 * 1024 * 1024,
        ),
    )(
        xp,
        packed["w1t"], packed["b1"],
        packed["w2"],
        packed["w3"], packed["b3"],
        packed["w4c"], packed["b4"],
    )
    return out[0, :B].reshape(B, 1)


def init_params(key):
    """PyTorch nn.Linear-style init: W (out, in), b (out,), U[-1/sqrt(in), 1/sqrt(in)]."""
    dims = [(9, 64), (64, 256), (256, 64), (64, 1)]
    params = {}
    keys = jax.random.split(key, 2 * len(dims))
    for i, (fan_in, fan_out) in enumerate(dims):
        bound = 1.0 / jnp.sqrt(float(fan_in))
        wk, bk = keys[2 * i], keys[2 * i + 1]
        params[f"w{i + 1}"] = jax.random.uniform(
            wk, (fan_out, fan_in), jnp.float32, minval=-bound, maxval=bound)
        params[f"b{i + 1}"] = jax.random.uniform(
            bk, (fan_out,), jnp.float32, minval=-bound, maxval=bound)
    return params


def ref_forward(x, p):
    h = jnp.maximum(x @ p["w1"].T + p["b1"], 0.0)
    h = jnp.maximum(h @ p["w2"].T + p["b2"], 0.0)
    h = jnp.maximum(h @ p["w3"].T + p["b3"], 0.0)
    return h @ p["w4"].T + p["b4"]


if __name__ == "__main__":
    key = jax.random.PRNGKey(0)
    pkey, xkey, xkey2 = jax.random.split(key, 3)

    params = init_params(pkey)
    packed = pack_params(params)

    # Small batch of 9-dimensional feature vectors (as the forward implies).
    x = jax.random.normal(xkey, (8, 9), dtype=jnp.float32)
    out = jax.block_until_ready(simple_conv_net_forward(x, packed))
    ref_out = ref_forward(x, params)
    assert out.shape == (8, 1)
    # bf16 MXU operands (f32 accumulation) -> looser tolerance than pure f32.
    assert jnp.allclose(out, ref_out, atol=3e-2, rtol=3e-2), \
        float(jnp.max(jnp.abs(out - ref_out)))

    # Exercise a multi-tile grid (grid > 1) and the non-multiple batch padding.
    x2 = jax.random.normal(xkey2, (384, 9), dtype=jnp.float32)
    out2 = jax.block_until_ready(simple_conv_net_forward(x2, packed))
    ref_out2 = ref_forward(x2, params)
    assert out2.shape == (384, 1)
    assert jnp.allclose(out2, ref_out2, atol=3e-2, rtol=3e-2), \
        float(jnp.max(jnp.abs(out2 - ref_out2)))

    print("KERNEL_OK")
</pallas_src>

<mosaic_0001>
module attributes {stable_mosaic.version = 11 : i64} {
  func.func @_mlp_kernel(%arg0: i32, %arg1: memref<128x9xf32, #tpu.memory_space<vmem>>, %arg2: memref<9x128xbf16, #tpu.memory_space<vmem>>, %arg3: memref<1x128xf32, #tpu.memory_space<vmem>>, %arg4: memref<256x128xbf16, #tpu.memory_space<vmem>>, %arg5: memref<128x256xbf16, #tpu.memory_space<vmem>>, %arg6: memref<128x1xf32, #tpu.memory_space<vmem>>, %arg7: memref<128x1xf32, #tpu.memory_space<vmem>>, %arg8: memref<1xf32, #tpu.memory_space<smem>>, %arg9: memref<1x128xf32, #tpu.memory_space<vmem>>) attributes {dimension_semantics = [#tpu.dimension_semantics<parallel>], iteration_bounds = array<i64: 1>, scalar_prefetch = 0 : i64, scratch_operands = 0 : i64, tpu.core_type = #tpu.core_type<tc>, window_params = [{transform_indices = @transform_0, window_bounds = array<i64: 128, 9>}, {pipeline_mode = #tpu.pipeline_mode<synchronous>, transform_indices = @transform_1, window_bounds = array<i64: 9, 128>}, {pipeline_mode = #tpu.pipeline_mode<synchronous>, transform_indices = @transform_2, window_bounds = array<i64: 1, 128>}, {pipeline_mode = #tpu.pipeline_mode<synchronous>, transform_indices = @transform_3, window_bounds = array<i64: 256, 128>}, {pipeline_mode = #tpu.pipeline_mode<synchronous>, transform_indices = @transform_4, window_bounds = array<i64: 128, 256>}, {pipeline_mode = #tpu.pipeline_mode<synchronous>, transform_indices = @transform_5, window_bounds = array<i64: 128, 1>}, {pipeline_mode = #tpu.pipeline_mode<synchronous>, transform_indices = @transform_6, window_bounds = array<i64: 128, 1>}, {transform_indices = @transform_7, window_bounds = array<i64: 1>}, {transform_indices = @transform_8, window_bounds = array<i64: 1, 128>}]} {
    %c0 = arith.constant 0 : index
    %c0_0 = arith.constant 0 : index
    %0 = vector.load %arg1[%c0, %c0_0] : memref<128x9xf32, #tpu.memory_space<vmem>>, vector<128x9xf32>
    %1 = arith.truncf %0 : vector<128x9xf32> to vector<128x9xbf16>
    %c0_1 = arith.constant 0 : index
    %c0_2 = arith.constant 0 : index
    %2 = vector.load %arg2[%c0_1, %c0_2] : memref<9x128xbf16, #tpu.memory_space<vmem>>, vector<9x128xbf16>
    %cst = arith.constant dense<0.000000e+00> : vector<128x128xf32>
    %3 = tpu.matmul %1, %2, %cst {dimension_numbers = #tpu.dot_dimension_numbers<[1], [0], [0], [1], [0, 0, 1, 1], [], []>} : vector<128x9xbf16>, vector<9x128xbf16>, vector<128x128xf32> -> vector<128x128xf32>
    %c0_3 = arith.constant 0 : index
    %c0_4 = arith.constant 0 : index
    %4 = vector.load %arg3[%c0_3, %c0_4] : memref<1x128xf32, #tpu.memory_space<vmem>>, vector<1x128xf32>
    %5 = vector.broadcast %4 : vector<1x128xf32> to vector<128x128xf32>
    %6 = arith.addf %3, %5 : vector<128x128xf32>
    %cst_5 = arith.constant 0.000000e+00 : f32
    %7 = vector.broadcast %cst_5 : f32 to vector<128x128xf32>
    %8 = arith.maximumf %6, %7 : vector<128x128xf32>
    %9 = arith.truncf %8 : vector<128x128xf32> to vector<128x128xbf16>
    %c0_6 = arith.constant 0 : index
    %c0_7 = arith.constant 0 : index
    %10 = vector.load %arg4[%c0_6, %c0_7] : memref<256x128xbf16, #tpu.memory_space<vmem>>, vector<256x128xbf16>
    %cst_8 = arith.constant dense<0.000000e+00> : vector<256x128xf32>
    %11 = tpu.matmul %10, %9, %cst_8 {dimension_numbers = #tpu.dot_dimension_numbers<[1], [1], [0], [0], [0, 0, 1, 0], [], []>} : vector<256x128xbf16>, vector<128x128xbf16>, vector<256x128xf32> -> vector<256x128xf32>
    %cst_9 = arith.constant 0.000000e+00 : f32
    %12 = vector.broadcast %cst_9 : f32 to vector<256x128xf32>
    %13 = arith.maximumf %11, %12 : vector<256x128xf32>
    %14 = arith.truncf %13 : vector<256x128xf32> to vector<256x128xbf16>
    %c0_10 = arith.constant 0 : index
    %c0_11 = arith.constant 0 : index
    %15 = vector.load %arg5[%c0_10, %c0_11] : memref<128x256xbf16, #tpu.memory_space<vmem>>, vector<128x256xbf16>
    %cst_12 = arith.constant dense<0.000000e+00> : vector<128x128xf32>
    %16 = tpu.matmul %15, %14, %cst_12 {dimension_numbers = #tpu.dot_dimension_numbers<[1], [0], [0], [1], [0, 0, 1, 1], [], []>} : vector<128x256xbf16>, vector<256x128xbf16>, vector<128x128xf32> -> vector<128x128xf32>
    %c0_13 = arith.constant 0 : index
    %c0_14 = arith.constant 0 : index
    %17 = vector.load %arg6[%c0_13, %c0_14] : memref<128x1xf32, #tpu.memory_space<vmem>>, vector<128x1xf32>
    %18 = vector.broadcast %17 : vector<128x1xf32> to vector<128x128xf32>
    %19 = arith.addf %16, %18 : vector<128x128xf32>
    %cst_15 = arith.constant 0.000000e+00 : f32
    %20 = vector.broadcast %cst_15 : f32 to vector<128x128xf32>
    %21 = arith.maximumf %19, %20 : vector<128x128xf32>
    %c0_16 = arith.constant 0 : index
    %c0_17 = arith.constant 0 : index
    %22 = vector.load %arg7[%c0_16, %c0_17] : memref<128x1xf32, #tpu.memory_space<vmem>>, vector<128x1xf32>
    %23 = vector.broadcast %22 : vector<128x1xf32> to vector<128x128xf32>
    %24 = arith.mulf %23, %21 : vector<128x128xf32>
    %cst_18 = arith.constant dense<0.000000e+00> : vector<128xf32>
    %25 = vector.multi_reduction <add>, %24, %cst_18 [0] : vector<128x128xf32> to vector<128xf32>
    %26 = vector.shape_cast %25 : vector<128xf32> to vector<1x128xf32>
    %c0_19 = arith.constant 0 : index
    %27 = memref.load %arg8[%c0_19] : memref<1xf32, #tpu.memory_space<smem>>
    %28 = vector.broadcast %27 : f32 to vector<1x128xf32>
    %29 = arith.addf %26, %28 : vector<1x128xf32>
    %c0_20 = arith.constant 0 : index
    %c0_21 = arith.constant 0 : index
    %30 = vector.load %arg9[%c0_20, %c0_21] : memref<1x128xf32, #tpu.memory_space<vmem>>, vector<1x128xf32>
    tpu.vector_store %arg9[%c0_20, %c0_21], %29 {strides = array<i32>} : memref<1x128xf32, #tpu.memory_space<vmem>>, vector<1x128xf32>,
    return
  }
  func.func @transform_0(%arg0: i32) -> (i32, i32) {
    %c0_i32 = arith.constant 0 : i32
    %c0_i32_0 = arith.constant 0 : i32
    return %arg0, %c0_i32 : i32, i32
  }
  func.func @transform_1(%arg0: i32) -> (i32, i32) {
    %c0_i32 = arith.constant 0 : i32
    %c0_i32_0 = arith.constant 0 : i32
    %c0_i32_1 = arith.constant 0 : i32
    return %c0_i32, %c0_i32_0 : i32, i32
  }
  func.func @transform_2(%arg0: i32) -> (i32, i32) {
    %c0_i32 = arith.constant 0 : i32
    %c0_i32_0 = arith.constant 0 : i32
    %c0_i32_1 = arith.constant 0 : i32
    return %c0_i32, %c0_i32_0 : i32, i32
  }
  func.func @transform_3(%arg0: i32) -> (i32, i32) {
    %c0_i32 = arith.constant 0 : i32
    %c0_i32_0 = arith.constant 0 : i32
    %c0_i32_1 = arith.constant 0 : i32
    return %c0_i32, %c0_i32_0 : i32, i32
  }
  func.func @transform_4(%arg0: i32) -> (i32, i32) {
    %c0_i32 = arith.constant 0 : i32
    %c0_i32_0 = arith.constant 0 : i32
    %c0_i32_1 = arith.constant 0 : i32
    return %c0_i32, %c0_i32_0 : i32, i32
  }
  func.func @transform_5(%arg0: i32) -> (i32, i32) {
    %c0_i32 = arith.constant 0 : i32
    %c0_i32_0 = arith.constant 0 : i32
    %c0_i32_1 = arith.constant 0 : i32
    return %c0_i32, %c0_i32_0 : i32, i32
  }
  func.func @transform_6(%arg0: i32) -> (i32, i32) {
    %c0_i32 = arith.constant 0 : i32
    %c0_i32_0 = arith.constant 0 : i32
    %c0_i32_1 = arith.constant 0 : i32
    return %c0_i32, %c0_i32_0 : i32, i32
  }
  func.func @transform_7(%arg0: i32) -> i32 {
    %c0_i32 = arith.constant 0 : i32
    %c0_i32_0 = arith.constant 0 : i32
    return %c0_i32 : i32
  }
  func.func @transform_8(%arg0: i32) -> (i32, i32) {
    %c0_i32 = arith.constant 0 : i32
    %c0_i32_0 = arith.constant 0 : i32
    return %c0_i32, %arg0 : i32, i32
  }
}

</mosaic_0001>

<llo_original>
// kernel: simple_conv_net_forward.1
$region0: #{simple_conv_net_forward.1}
  #allocation0 [shape = 'u32[]', space=smem, size = 0x4, offset = 0x4, fixed_abs, tag = 'smem constant byte address 0x4 - core index']
  #allocation1 [shape = 'u32[72,128]{1,0:T(1,128)}', space=vmem, size = 0x9000, scoped, tag = 'internal scratch']
  #allocation2 [shape = 'f32[1]{0:T(128)S(6)}', space=smem, size = 0x200, scoped, tag = 'scoped memory for simple_conv_net_forward.1']
  %s0 = inlined_call_operand.vmem [shape: f32[128,9], index: 0, kind: input, shape index: {}]
  %s1 = inlined_call_operand.vmem [shape: bf16[9,128], index: 1, kind: input, shape index: {}]
  %s2 = inlined_call_operand.vmem [shape: f32[1,128], index: 2, kind: input, shape index: {}]
  %s3 = inlined_call_operand.vmem [shape: bf16[256,128], index: 3, kind: input, shape index: {}]
  %s4 = inlined_call_operand.vmem [shape: bf16[128,256], index: 4, kind: input, shape index: {}]
  %s5 = inlined_call_operand.vmem [shape: f32[128,1], index: 5, kind: input, shape index: {}]
  %s6 = inlined_call_operand.vmem [shape: f32[128,1], index: 6, kind: input, shape index: {}]
  %s7 = inlined_call_operand.<no memory space> [shape: f32[1], index: 7, kind: input, shape index: {}]
  %s8 = inlined_call_operand.vmem [shape: f32[1,128], index: 8, kind: output, shape index: {}]
  %s9 = sld [smem:[#allocation0]]
  $region42: #{simple_conv_net_forward.1} parent=0
    _
  %s11 = ssub.s32 1, %s9
  %s12 = scalar_select 0, %s11, %s9
  %13 = sst [smem:[#allocation2]] %s7
  // Predicated region
  $region2: #{simple_conv_net_forward.1} parent=0 // pred_check
    _
  $region3: #{simple_conv_net_forward.1} parent=0 // pred_check_branch
    %15 = sbr.rel (0) target = $region5
  $region4: #{simple_conv_net_forward.1} parent=0 // pred_region
    _
  $region5: #{simple_conv_net_forward.1} parent=0 // pred_fallthru
    _
  // Predicated region
  $region6: #{simple_conv_net_forward.1} parent=0 // pred_check
    _
  $region7: #{simple_conv_net_forward.1} parent=0 // pred_check_branch
    %17 = sbr.rel (0) target = $region9
  $region8: #{simple_conv_net_forward.1} parent=0 // pred_region
    _
  $region9: #{simple_conv_net_forward.1} parent=0 // pred_fallthru
    _
  // Predicated region
  $region10: #{simple_conv_net_forward.1} parent=0 // pred_check
    _
  $region11: #{simple_conv_net_forward.1} parent=0 // pred_check_branch
    %19 = sbr.rel (0) target = $region13
  $region12: #{simple_conv_net_forward.1} parent=0 // pred_region
    _
  $region13: #{simple_conv_net_forward.1} parent=0 // pred_fallthru
    _
  // Predicated region
  $region14: #{simple_conv_net_forward.1} parent=0 // pred_check
    _
  $region15: #{simple_conv_net_forward.1} parent=0 // pred_check_branch
    %21 = sbr.rel (0) target = $region17
  $region16: #{simple_conv_net_forward.1} parent=0 // pred_region
    _
  $region17: #{simple_conv_net_forward.1} parent=0 // pred_fallthru
    _
  // Predicated region
  $region18: #{simple_conv_net_forward.1} parent=0 // pred_check
    _
  $region19: #{simple_conv_net_forward.1} parent=0 // pred_check_branch
    %23 = sbr.rel (0) target = $region21
  $region20: #{simple_conv_net_forward.1} parent=0 // pred_region
    _
  $region21: #{simple_conv_net_forward.1} parent=0 // pred_fallthru
    _
  // Predicated region
  $region22: #{simple_conv_net_forward.1} parent=0 // pred_check
    _
  $region23: #{simple_conv_net_forward.1} parent=0 // pred_check_branch
    %25 = sbr.rel (0) target = $region25
  $region24: #{simple_conv_net_forward.1} parent=0 // pred_region
    _
  $region25: #{simple_conv_net_forward.1} parent=0 // pred_fallthru
    _
  // Predicated region
  $region26: #{simple_conv_net_forward.1} parent=0 // pred_check
    _
  $region27: #{simple_conv_net_forward.1} parent=0 // pred_check_branch
    %27 = sbr.rel (0) target = $region29
  $region28: #{simple_conv_net_forward.1} parent=0 // pred_region
    _
  $region29: #{simple_conv_net_forward.1} parent=0 // pred_fallthru
    _
  // Predicated region
  $region30: #{simple_conv_net_forward.1} parent=0 // pred_check
    _
  $region31: #{simple_conv_net_forward.1} parent=0 // pred_check_branch
    %29 = sbr.rel (0) target = $region33
  $region32: #{simple_conv_net_forward.1} parent=0 // pred_region
    _
  $region33: #{simple_conv_net_forward.1} parent=0 // pred_fallthru
    _
  %v31 = vld [vmem:[%s0] sm:$0xff]
  %v32 = vld [vmem:[%s0 + $0x8] sm:$0xff]
  %v33 = vld [vmem:[%s0 + $0x10] sm:$0xff]
  %v34 = vld [vmem:[%s0 + $0x18] sm:$0xff]
  %v35 = vld [vmem:[%s0 + $0x20] sm:$0xff]
  %v36 = vld [vmem:[%s0 + $0x28] sm:$0xff]
  %v37 = vld [vmem:[%s0 + $0x30] sm:$0xff]
  %v38 = vld [vmem:[%s0 + $0x38] sm:$0xff]
  %v39 = vld [vmem:[%s0 + $0x40] sm:$0xff]
  %v40 = vld [vmem:[%s0 + $0x48] sm:$0xff]
  %v41 = vld [vmem:[%s0 + $0x50] sm:$0xff]
  %v42 = vld [vmem:[%s0 + $0x58] sm:$0xff]
  %v43 = vld [vmem:[%s0 + $0x60] sm:$0xff]
  %v44 = vld [vmem:[%s0 + $0x68] sm:$0xff]
  %v45 = vld [vmem:[%s0 + $0x70] sm:$0xff]
  %v46 = vld [vmem:[%s0 + $0x78] sm:$0xff]
  %v47 = vpack.c.bf16 %v32, %v31
  %v48 = vpack.c.bf16 %v34, %v33
  %v49 = vpack.c.bf16 %v36, %v35
  %v50 = vpack.c.bf16 %v38, %v37
  %v51 = vpack.c.bf16 %v40, %v39
  %v52 = vpack.c.bf16 %v42, %v41
  %v53 = vpack.c.bf16 %v44, %v43
  %v54 = vpack.c.bf16 %v46, %v45
  %v55 = vld [vmem:[%s1] sm:$0xf]
  %v56 = vld [vmem:[%s1 + $0x4] sm:$0x1]
  %v57 = vld [vmem:[%s2] sm:$0x1]
  %v59 = vperm.slane %v57, 0
  %v63 = vunpack.c.l.b16 %v55
  %v64 = vunpack.c.l.b16 %v56
  %v65 = vpack.c.b16 %v64, %v63
  %vm66 = vcmask 72704
  %v68 = vsel %vm66, %v47, 0
  %v71 = vsel %vm66, %v48, 0
  %v74 = vsel %vm66, %v49, 0
  %v77 = vsel %vm66, %v50, 0
  %v80 = vsel %vm66, %v51, 0
  %v83 = vsel %vm66, %v52, 0
  %v86 = vsel %vm66, %v53, 0
  %v89 = vsel %vm66, %v54, 0
  %vm91 = vcmask 1043456
  %vm92 = vcmask 1044480
  %v93 = vsel %vm91, 4294967295, 65535
  %v94 = vsel %vm92, %v93, 0
  %v96 = vand.u32 %v65, %v94
  %98 = vmatpush.bf16.msra.mxu0 0
  %99 = vmatpush.bf16.msra.mxu0 0
  %100 = vmatpush.bf16.msra.mxu0 0
  %101 = vmatpush.bf16.msra.mxu0 0
  %102 = vmatpush.bf16.msra.mxu0 0
  %103 = vmatpush.bf16.msra.mxu0 0
  %104 = vmatpush.bf16.msra.mxu0 0
  %105 = vmatpush.bf16.msra.mxu0 %v96
  %106 = vmatmul.bf16.gmra.mxu0 %v68
  %v107 = vpop.f32.mrf.mxu0
  %v108 = vadd.f32 %v59, %v107
  %v109 = vpop.f32.mrf.mxu0
  %v110 = vadd.f32 %v59, %v109
  %111 = vmatmul.bf16.gmra.mxu0 %v71
  %v112 = vpop.f32.mrf.mxu0
  %v113 = vadd.f32 %v59, %v112
  %v114 = vpop.f32.mrf.mxu0
  %v115 = vadd.f32 %v59, %v114
  %116 = vmatmul.bf16.gmra.mxu0 %v74
  %v117 = vpop.f32.mrf.mxu0
  %v118 = vadd.f32 %v59, %v117
  %v119 = vpop.f32.mrf.mxu0
  %v120 = vadd.f32 %v59, %v119
  %121 = vmatmul.bf16.gmra.mxu0 %v77
  %v122 = vpop.f32.mrf.mxu0
  %v123 = vadd.f32 %v59, %v122
  %v124 = vpop.f32.mrf.mxu0
  %v125 = vadd.f32 %v59, %v124
  %126 = vmatmul.bf16.gmra.mxu0 %v80
  %v127 = vpop.f32.mrf.mxu0
  %v128 = vadd.f32 %v59, %v127
  %v129 = vpop.f32.mrf.mxu0
  %v130 = vadd.f32 %v59, %v129
  %131 = vmatmul.bf16.gmra.mxu0 %v83
  %v132 = vpop.f32.mrf.mxu0
  %v133 = vadd.f32 %v59, %v132
  %v134 = vpop.f32.mrf.mxu0
  %v135 = vadd.f32 %v59, %v134
  %136 = vmatmul.bf16.gmra.mxu0 %v86
  %v137 = vpop.f32.mrf.mxu0
  %v138 = vadd.f32 %v59, %v137
  %v139 = vpop.f32.mrf.mxu0
  %v140 = vadd.f32 %v59, %v139
  %141 = vmatmul.bf16.gmra.mxu0 %v89
  %v142 = vpop.f32.mrf.mxu0
  %v143 = vadd.f32 %v59, %v142
  %v144 = vpop.f32.mrf.mxu0
  %v145 = vadd.f32 %v59, %v144
  %146 = vdwg.mxu0
  %v147 = vmax.f32 %v108, 0.0
  %v148 = vmax.f32 %v110, 0.0
  %v149 = vmax.f32 %v113, 0.0
  %v150 = vmax.f32 %v115, 0.0
  %v151 = vmax.f32 %v118, 0.0
  %v152 = vmax.f32 %v120, 0.0
  %v153 = vmax.f32 %v123, 0.0
  %v154 = vmax.f32 %v125, 0.0
  %v155 = vmax.f32 %v128, 0.0
  %v156 = vmax.f32 %v130, 0.0
  %v157 = vmax.f32 %v133, 0.0
  %v158 = vmax.f32 %v135, 0.0
  %v159 = vmax.f32 %v138, 0.0
  %v160 = vmax.f32 %v140, 0.0
  %v161 = vmax.f32 %v143, 0.0
  %v162 = vmax.f32 %v145, 0.0
  %v163 = vpack.c.bf16 %v148, %v147
  %v164 = vpack.c.bf16 %v150, %v149
  %v165 = vpack.c.bf16 %v152, %v151
  %v166 = vpack.c.bf16 %v154, %v153
  %v167 = vpack.c.bf16 %v156, %v155
  %v168 = vpack.c.bf16 %v158, %v157
  %v169 = vpack.c.bf16 %v160, %v159
  %v170 = vpack.c.bf16 %v162, %v161
  %v171 = vld [vmem:[%s3] sm:$0xf]
  %v172 = vld [vmem:[%s3 + $0x4] sm:$0xf]
  %v173 = vld [vmem:[%s3 + $0x8] sm:$0xf]
  %v174 = vld [vmem:[%s3 + $0xc] sm:$0xf]
  %v175 = vld [vmem:[%s3 + $0x10] sm:$0xf]
  %v176 = vld [vmem:[%s3 + $0x14] sm:$0xf]
  %v177 = vld [vmem:[%s3 + $0x18] sm:$0xf]
  %v178 = vld [vmem:[%s3 + $0x1c] sm:$0xf]
  %v179 = vld [vmem:[%s3 + $0x20] sm:$0xf]
  %v180 = vld [vmem:[%s3 + $0x24] sm:$0xf]
  %v181 = vld [vmem:[%s3 + $0x28] sm:$0xf]
  %v182 = vld [vmem:[%s3 + $0x2c] sm:$0xf]
  %v183 = vld [vmem:[%s3 + $0x30] sm:$0xf]
  %v184 = vld [vmem:[%s3 + $0x34] sm:$0xf]
  %v185 = vld [vmem:[%s3 + $0x38] sm:$0xf]
  %v186 = vld [vmem:[%s3 + $0x3c] sm:$0xf]
  %v187 = vld [vmem:[%s3 + $0x40] sm:$0xf]
  %v188 = vld [vmem:[%s3 + $0x44] sm:$0xf]
  %v189 = vld [vmem:[%s3 + $0x48] sm:$0xf]
  %v190 = vld [vmem:[%s3 + $0x4c] sm:$0xf]
  %v191 = vld [vmem:[%s3 + $0x50] sm:$0xf]
  %v192 = vld [vmem:[%s3 + $0x54] sm:$0xf]
  %v193 = vld [vmem:[%s3 + $0x58] sm:$0xf]
  %v194 = vld [vmem:[%s3 + $0x5c] sm:$0xf]
  %v195 = vld [vmem:[%s3 + $0x60] sm:$0xf]
  %v196 = vld [vmem:[%s3 + $0x64] sm:$0xf]
  %v197 = vld [vmem:[%s3 + $0x68] sm:$0xf]
  %v198 = vld [vmem:[%s3 + $0x6c] sm:$0xf]
  %v199 = vld [vmem:[%s3 + $0x70] sm:$0xf]
  %v200 = vld [vmem:[%s3 + $0x74] sm:$0xf]
  %v201 = vld [vmem:[%s3 + $0x78] sm:$0xf]
  %v202 = vld [vmem:[%s3 + $0x7c] sm:$0xf]
  %v235 = vunpack.c.l.b16 %v171
  %v236 = vunpack.c.l.b16 %v172
  %v237 = vunpack.c.l.b16 %v173
  %v238 = vunpack.c.l.b16 %v174
  %v239 = vunpack.c.l.b16 %v175
  %v240 = vunpack.c.l.b16 %v176
  %v241 = vunpack.c.l.b16 %v177
  %v242 = vunpack.c.l.b16 %v178
  %v243 = vunpack.c.l.b16 %v179
  %v244 = vunpack.c.l.b16 %v180
  %v245 = vunpack.c.l.b16 %v181
  %v246 = vunpack.c.l.b16 %v182
  %v247 = vunpack.c.l.b16 %v183
  %v248 = vunpack.c.l.b16 %v184
  %v249 = vunpack.c.l.b16 %v185
  %v250 = vunpack.c.l.b16 %v186
  %v251 = vunpack.c.l.b16 %v187
  %v252 = vunpack.c.l.b16 %v188
  %v253 = vunpack.c.l.b16 %v189
  %v254 = vunpack.c.l.b16 %v190
  %v255 = vunpack.c.l.b16 %v191
  %v256 = vunpack.c.l.b16 %v192
  %v257 = vunpack.c.l.b16 %v193
  %v258 = vunpack.c.l.b16 %v194
  %v259 = vunpack.c.l.b16 %v195
  %v260 = vunpack.c.l.b16 %v196
  %v261 = vunpack.c.l.b16 %v197
  %v262 = vunpack.c.l.b16 %v198
  %v263 = vunpack.c.l.b16 %v199
  %v264 = vunpack.c.l.b16 %v200
  %v265 = vunpack.c.l.b16 %v201
  %v266 = vunpack.c.l.b16 %v202
  %v267 = vpack.c.b16 %v236, %v235
  %v268 = vpack.c.b16 %v238, %v237
  %v269 = vpack.c.b16 %v240, %v239
  %v270 = vpack.c.b16 %v242, %v241
  %v271 = vpack.c.b16 %v244, %v243
  %v272 = vpack.c.b16 %v246, %v245
  %v273 = vpack.c.b16 %v248, %v247
  %v274 = vpack.c.b16 %v250, %v249
  %v275 = vpack.c.b16 %v252, %v251
  %v276 = vpack.c.b16 %v254, %v253
  %v277 = vpack.c.b16 %v256, %v255
  %v278 = vpack.c.b16 %v258, %v257
  %v279 = vpack.c.b16 %v260, %v259
  %v280 = vpack.c.b16 %v262, %v261
  %v281 = vpack.c.b16 %v264, %v263
  %v282 = vpack.c.b16 %v266, %v265
  %299 = vmatpush.bf16.xpose.msra.mxu0 %v170
  %300 = vmatpush.bf16.xpose.msra.mxu0 %v169
  %301 = vmatpush.bf16.xpose.msra.mxu0 %v168
  %302 = vmatpush.bf16.xpose.msra.mxu0 %v167
  %303 = vmatpush.bf16.xpose.msra.mxu0 %v166
  %304 = vmatpush.bf16.xpose.msra.mxu0 %v165
  %305 = vmatpush.bf16.xpose.msra.mxu0 %v164
  %306 = vmatpush.bf16.xpose.msra.mxu0 %v163
  %307 = vmatmul.bf16.gmra.mxu0 %v267
  %v308 = vpop.f32.mrf.mxu0
  %v309 = vadd.f32 0.0, %v308
  %v310 = vpop.f32.mrf.mxu0
  %v311 = vadd.f32 0.0, %v310
  %312 = vmatmul.bf16.gmra.mxu0 %v268
  %v313 = vpop.f32.mrf.mxu0
  %v314 = vadd.f32 0.0, %v313
  %v315 = vpop.f32.mrf.mxu0
  %v316 = vadd.f32 0.0, %v315
  %317 = vmatmul.bf16.gmra.mxu0 %v269
  %v318 = vpop.f32.mrf.mxu0
  %v319 = vadd.f32 0.0, %v318
  %v320 = vpop.f32.mrf.mxu0
  %v321 = vadd.f32 0.0, %v320
  %322 = vmatmul.bf16.gmra.mxu0 %v270
  %v323 = vpop.f32.mrf.mxu0
  %v324 = vadd.f32 0.0, %v323
  %v325 = vpop.f32.mrf.mxu0
  %v326 = vadd.f32 0.0, %v325
  %327 = vmatmul.bf16.gmra.mxu0 %v271
  %v328 = vpop.f32.mrf.mxu0
  %v329 = vadd.f32 0.0, %v328
  %v330 = vpop.f32.mrf.mxu0
  %v331 = vadd.f32 0.0, %v330
  %332 = vmatmul.bf16.gmra.mxu0 %v272
  %v333 = vpop.f32.mrf.mxu0
  %v334 = vadd.f32 0.0, %v333
  %v335 = vpop.f32.mrf.mxu0
  %v336 = vadd.f32 0.0, %v335
  %337 = vmatmul.bf16.gmra.mxu0 %v273
  %v338 = vpop.f32.mrf.mxu0
  %v339 = vadd.f32 0.0, %v338
  %v340 = vpop.f32.mrf.mxu0
  %v341 = vadd.f32 0.0, %v340
  %342 = vmatmul.bf16.gmra.mxu0 %v274
  %v343 = vpop.f32.mrf.mxu0
  %v344 = vadd.f32 0.0, %v343
  %v345 = vpop.f32.mrf.mxu0
  %v346 = vadd.f32 0.0, %v345
  %347 = vmatmul.bf16.gmra.mxu0 %v275
  %v348 = vpop.f32.mrf.mxu0
  %v349 = vadd.f32 0.0, %v348
  %v350 = vpop.f32.mrf.mxu0
  %v351 = vadd.f32 0.0, %v350
  %352 = vmatmul.bf16.gmra.mxu0 %v276
  %v353 = vpop.f32.mrf.mxu0
  %v354 = vadd.f32 0.0, %v353
  %v355 = vpop.f32.mrf.mxu0
  %v356 = vadd.f32 0.0, %v355
  %357 = vmatmul.bf16.gmra.mxu0 %v277
  %v358 = vpop.f32.mrf.mxu0
  %v359 = vadd.f32 0.0, %v358
  %v360 = vpop.f32.mrf.mxu0
  %v361 = vadd.f32 0.0, %v360
  %362 = vmatmul.bf16.gmra.mxu0 %v278
  %v363 = vpop.f32.mrf.mxu0
  %v364 = vadd.f32 0.0, %v363
  %v365 = vpop.f32.mrf.mxu0
  %v366 = vadd.f32 0.0, %v365
  %367 = vmatmul.bf16.gmra.mxu0 %v279
  %v368 = vpop.f32.mrf.mxu0
  %v369 = vadd.f32 0.0, %v368
  %v370 = vpop.f32.mrf.mxu0
  %v371 = vadd.f32 0.0, %v370
  %372 = vmatmul.bf16.gmra.mxu0 %v280
  %v373 = vpop.f32.mrf.mxu0
  %v374 = vadd.f32 0.0, %v373
  %v375 = vpop.f32.mrf.mxu0
  %v376 = vadd.f32 0.0, %v375
  %377 = vmatmul.bf16.gmra.mxu0 %v281
  %v378 = vpop.f32.mrf.mxu0
  %v379 = vadd.f32 0.0, %v378
  %v380 = vpop.f32.mrf.mxu0
  %v381 = vadd.f32 0.0, %v380
  %382 = vmatmul.bf16.gmra.mxu0 %v282
  %v383 = vpop.f32.mrf.mxu0
  %v384 = vadd.f32 0.0, %v383
  %v385 = vpop.f32.mrf.mxu0
  %v386 = vadd.f32 0.0, %v385
  %387 = vdwg.mxu0
  %v388 = vmax.f32 %v309, 0.0
  %v389 = vmax.f32 %v311, 0.0
  %v390 = vmax.f32 %v314, 0.0
  %v391 = vmax.f32 %v316, 0.0
  %v392 = vmax.f32 %v319, 0.0
  %v393 = vmax.f32 %v321, 0.0
  %v394 = vmax.f32 %v324, 0.0
  %v395 = vmax.f32 %v326, 0.0
  %v396 = vmax.f32 %v329, 0.0
  %v397 = vmax.f32 %v331, 0.0
  %v398 = vmax.f32 %v334, 0.0
  %v399 = vmax.f32 %v336, 0.0
  %v400 = vmax.f32 %v339, 0.0
  %v401 = vmax.f32 %v341, 0.0
  %v402 = vmax.f32 %v344, 0.0
  %v403 = vmax.f32 %v346, 0.0
  %v404 = vmax.f32 %v349, 0.0
  %v405 = vmax.f32 %v351, 0.0
  %v406 = vmax.f32 %v354, 0.0
  %v407 = vmax.f32 %v356, 0.0
  %v408 = vmax.f32 %v359, 0.0
  %v409 = vmax.f32 %v361, 0.0
  %v410 = vmax.f32 %v364, 0.0
  %v411 = vmax.f32 %v366, 0.0
  %v412 = vmax.f32 %v369, 0.0
  %v413 = vmax.f32 %v371, 0.0
  %v414 = vmax.f32 %v374, 0.0
  %v415 = vmax.f32 %v376, 0.0
  %v416 = vmax.f32 %v379, 0.0
  %v417 = vmax.f32 %v381, 0.0
  %v418 = vmax.f32 %v384, 0.0
  %v419 = vmax.f32 %v386, 0.0
  %v420 = vpack.c.bf16 %v389, %v388
  %v421 = vpack.c.bf16 %v391, %v390
  %v422 = vpack.c.bf16 %v393, %v392
  %v423 = vpack.c.bf16 %v395, %v394
  %v424 = vpack.c.bf16 %v397, %v396
  %v425 = vpack.c.bf16 %v399, %v398
  %v426 = vpack.c.bf16 %v401, %v400
  %v427 = vpack.c.bf16 %v403, %v402
  %v428 = vpack.c.bf16 %v405, %v404
  %v429 = vpack.c.bf16 %v407, %v406
  %v430 = vpack.c.bf16 %v409, %v408
  %v431 = vpack.c.bf16 %v411, %v410
  %v432 = vpack.c.bf16 %v413, %v412
  %v433 = vpack.c.bf16 %v415, %v414
  %v434 = vpack.c.bf16 %v417, %v416
  %v435 = vpack.c.bf16 %v419, %v418
  %v436 = vld [vmem:[%s4] sm:$0xff]
  %v437 = vld [vmem:[%s4 + $0x8] sm:$0xff]
  %v438 = vld [vmem:[%s4 + $0x10] sm:$0xff]
  %v439 = vld [vmem:[%s4 + $0x18] sm:$0xff]
  %v440 = vld [vmem:[%s4 + $0x20] sm:$0xff]
  %v441 = vld [vmem:[%s4 + $0x28] sm:$0xff]
  %v442 = vld [vmem:[%s4 + $0x30] sm:$0xff]
  %v443 = vld [vmem:[%s4 + $0x38] sm:$0xff]
  %v444 = vld [vmem:[%s4 + $0x40] sm:$0xff]
  %v445 = vld [vmem:[%s4 + $0x48] sm:$0xff]
  %v446 = vld [vmem:[%s4 + $0x50] sm:$0xff]
  %v447 = vld [vmem:[%s4 + $0x58] sm:$0xff]
  %v448 = vld [vmem:[%s4 + $0x60] sm:$0xff]
  %v449 = vld [vmem:[%s4 + $0x68] sm:$0xff]
  %v450 = vld [vmem:[%s4 + $0x70] sm:$0xff]
  %v451 = vld [vmem:[%s4 + $0x78] sm:$0xff]
  %v452 = vld [vmem:[%s5] sm:$0xff]
  %v453 = vld [vmem:[%s5 + $0x8] sm:$0xff]
  %v454 = vld [vmem:[%s5 + $0x10] sm:$0xff]
  %v455 = vld [vmem:[%s5 + $0x18] sm:$0xff]
  %v456 = vld [vmem:[%s5 + $0x20] sm:$0xff]
  %v457 = vld [vmem:[%s5 + $0x28] sm:$0xff]
  %v458 = vld [vmem:[%s5 + $0x30] sm:$0xff]
  %v459 = vld [vmem:[%s5 + $0x38] sm:$0xff]
  %v460 = vld [vmem:[%s5 + $0x40] sm:$0xff]
  %v461 = vld [vmem:[%s5 + $0x48] sm:$0xff]
  %v462 = vld [vmem:[%s5 + $0x50] sm:$0xff]
  %v463 = vld [vmem:[%s5 + $0x58] sm:$0xff]
  %v464 = vld [vmem:[%s5 + $0x60] sm:$0xff]
  %v465 = vld [vmem:[%s5 + $0x68] sm:$0xff]
  %v466 = vld [vmem:[%s5 + $0x70] sm:$0xff]
  %v467 = vld [vmem:[%s5 + $0x78] sm:$0xff]
  %469 = vset.pattern.permute.xlu0 0
  %470 = vperm.xlu0 %469, %v452
  %v471 = vpop.permute.xlu0 %470
  %474 = vset.pattern.permute.xlu0 0
  %475 = vperm.xlu0 %474, %v453
  %v476 = vpop.permute.xlu0 %475
  %479 = vset.pattern.permute.xlu0 0
  %480 = vperm.xlu0 %479, %v454
  %v481 = vpop.permute.xlu0 %480
  %484 = vset.pattern.permute.xlu0 0
  %485 = vperm.xlu0 %484, %v455
  %v486 = vpop.permute.xlu0 %485
  %489 = vset.pattern.permute.xlu0 0
  %490 = vperm.xlu0 %489, %v456
  %v491 = vpop.permute.xlu0 %490
  %494 = vset.pattern.permute.xlu0 0
  %495 = vperm.xlu0 %494, %v457
  %v496 = vpop.permute.xlu0 %495
  %499 = vset.pattern.permute.xlu0 0
  %500 = vperm.xlu0 %499, %v458
  %v501 = vpop.permute.xlu0 %500
  %504 = vset.pattern.permute.xlu0 0
  %505 = vperm.xlu0 %504, %v459
  %v506 = vpop.permute.xlu0 %505
  %509 = vset.pattern.permute.xlu0 0
  %510 = vperm.xlu0 %509, %v460
  %v511 = vpop.permute.xlu0 %510
  %514 = vset.pattern.permute.xlu0 0
  %515 = vperm.xlu0 %514, %v461
  %v516 = vpop.permute.xlu0 %515
  %519 = vset.pattern.permute.xlu0 0
  %520 = vperm.xlu0 %519, %v462
  %v521 = vpop.permute.xlu0 %520
  %524 = vset.pattern.permute.xlu0 0
  %525 = vperm.xlu0 %524, %v463
  %v526 = vpop.permute.xlu0 %525
  %529 = vset.pattern.permute.xlu0 0
  %530 = vperm.xlu0 %529, %v464
  %v531 = vpop.permute.xlu0 %530
  %534 = vset.pattern.permute.xlu0 0
  %535 = vperm.xlu0 %534, %v465
  %v536 = vpop.permute.xlu0 %535
  %539 = vset.pattern.permute.xlu0 0
  %540 = vperm.xlu0 %539, %v466
  %v541 = vpop.permute.xlu0 %540
  %544 = vset.pattern.permute.xlu0 0
  %545 = vperm.xlu0 %544, %v467
  %v546 = vpop.permute.xlu0 %545
  %v564 = vunpack.c.l.b16 %v436
  %v565 = vunpack.c.h.b16 %v436
  %v566 = vunpack.c.l.b16 %v437
  %v567 = vunpack.c.h.b16 %v437
  %v568 = vunpack.c.l.b16 %v438
  %v569 = vunpack.c.h.b16 %v438
  %v570 = vunpack.c.l.b16 %v439
  %v571 = vunpack.c.h.b16 %v439
  %v572 = vunpack.c.l.b16 %v440
  %v573 = vunpack.c.h.b16 %v440
  %v574 = vunpack.c.l.b16 %v441
  %v575 = vunpack.c.h.b16 %v441
  %v576 = vunpack.c.l.b16 %v442
  %v577 = vunpack.c.h.b16 %v442
  %v578 = vunpack.c.l.b16 %v443
  %v579 = vunpack.c.h.b16 %v443
  %v580 = vunpack.c.l.b16 %v444
  %v581 = vunpack.c.h.b16 %v444
  %v582 = vunpack.c.l.b16 %v445
  %v583 = vunpack.c.h.b16 %v445
  %v584 = vunpack.c.l.b16 %v446
  %v585 = vunpack.c.h.b16 %v446
  %v586 = vunpack.c.l.b16 %v447
  %v587 = vunpack.c.h.b16 %v447
  %v588 = vunpack.c.l.b16 %v448
  %v589 = vunpack.c.h.b16 %v448
  %v590 = vunpack.c.l.b16 %v449
  %v591 = vunpack.c.h.b16 %v449
  %v592 = vunpack.c.l.b16 %v450
  %v593 = vunpack.c.h.b16 %v450
  %v594 = vunpack.c.l.b16 %v451
  %v595 = vunpack.c.h.b16 %v451
  %v596 = vpack.c.b16 %v566, %v564
  %v597 = vpack.c.b16 %v567, %v565
  %v598 = vpack.c.b16 %v570, %v568
  %v599 = vpack.c.b16 %v571, %v569
  %v600 = vpack.c.b16 %v574, %v572
  %v601 = vpack.c.b16 %v575, %v573
  %v602 = vpack.c.b16 %v578, %v576
  %v603 = vpack.c.b16 %v579, %v577
  %v604 = vpack.c.b16 %v582, %v580
  %v605 = vpack.c.b16 %v583, %v581
  %v606 = vpack.c.b16 %v586, %v584
  %v607 = vpack.c.b16 %v587, %v585
  %v608 = vpack.c.b16 %v590, %v588
  %v609 = vpack.c.b16 %v591, %v589
  %v610 = vpack.c.b16 %v594, %v592
  %v611 = vpack.c.b16 %v595, %v593
  %628 = vmatpush.bf16.msra.mxu0 %v427
  %629 = vmatpush.bf16.msra.mxu0 %v426
  %630 = vmatpush.bf16.msra.mxu0 %v425
  %631 = vmatpush.bf16.msra.mxu0 %v424
  %632 = vmatpush.bf16.msra.mxu0 %v423
  %633 = vmatpush.bf16.msra.mxu0 %v422
  %634 = vmatpush.bf16.msra.mxu0 %v421
  %635 = vmatpush.bf16.msra.mxu0 %v420
  %636 = vmatmul.bf16.gmra.mxu0 %v596
  %v637 = vpop.f32.mrf.mxu0
  %v638 = vadd.f32 %v471, %v637
  %v639 = vpop.f32.mrf.mxu0
  %v640 = vadd.f32 %v476, %v639
  %641 = vmatmul.bf16.gmra.mxu0 %v598
  %v642 = vpop.f32.mrf.mxu0
  %v643 = vadd.f32 %v481, %v642
  %v644 = vpop.f32.mrf.mxu0
  %v645 = vadd.f32 %v486, %v644
  %646 = vmatmul.bf16.gmra.mxu0 %v600
  %v647 = vpop.f32.mrf.mxu0
  %v648 = vadd.f32 %v491, %v647
  %v649 = vpop.f32.mrf.mxu0
  %v650 = vadd.f32 %v496, %v649
  %651 = vmatmul.bf16.gmra.mxu0 %v602
  %v652 = vpop.f32.mrf.mxu0
  %v653 = vadd.f32 %v501, %v652
  %v654 = vpop.f32.mrf.mxu0
  %v655 = vadd.f32 %v506, %v654
  %656 = vmatmul.bf16.gmra.mxu0 %v604
  %v657 = vpop.f32.mrf.mxu0
  %v658 = vadd.f32 %v511, %v657
  %v659 = vpop.f32.mrf.mxu0
  %v660 = vadd.f32 %v516, %v659
  %661 = vmatmul.bf16.gmra.mxu0 %v606
  %v662 = vpop.f32.mrf.mxu0
  %v663 = vadd.f32 %v521, %v662
  %v664 = vpop.f32.mrf.mxu0
  %v665 = vadd.f32 %v526, %v664
  %666 = vmatmul.bf16.gmra.mxu0 %v608
  %v667 = vpop.f32.mrf.mxu0
  %v668 = vadd.f32 %v531, %v667
  %v669 = vpop.f32.mrf.mxu0
  %v670 = vadd.f32 %v536, %v669
  %671 = vmatmul.bf16.gmra.mxu0 %v610
  %v672 = vpop.f32.mrf.mxu0
  %v673 = vadd.f32 %v541, %v672
  %v674 = vpop.f32.mrf.mxu0
  %v675 = vadd.f32 %v546, %v674
  %676 = vdwg.mxu0
  %677 = vmatpush.bf16.msra.mxu0 %v435
  %678 = vmatpush.bf16.msra.mxu0 %v434
  %679 = vmatpush.bf16.msra.mxu0 %v433
  %680 = vmatpush.bf16.msra.mxu0 %v432
  %681 = vmatpush.bf16.msra.mxu0 %v431
  %682 = vmatpush.bf16.msra.mxu0 %v430
  %683 = vmatpush.bf16.msra.mxu0 %v429
  %684 = vmatpush.bf16.msra.mxu0 %v428
  %685 = vmatmul.bf16.gmra.mxu0 %v597
  %v686 = vpop.f32.mrf.mxu0
  %v687 = vadd.f32 %v638, %v686
  %v688 = vpop.f32.mrf.mxu0
  %v689 = vadd.f32 %v640, %v688
  %690 = vmatmul.bf16.gmra.mxu0 %v599
  %v691 = vpop.f32.mrf.mxu0
  %v692 = vadd.f32 %v643, %v691
  %v693 = vpop.f32.mrf.mxu0
  %v694 = vadd.f32 %v645, %v693
  %695 = vmatmul.bf16.gmra.mxu0 %v601
  %v696 = vpop.f32.mrf.mxu0
  %v697 = vadd.f32 %v648, %v696
  %v698 = vpop.f32.mrf.mxu0
  %v699 = vadd.f32 %v650, %v698
  %700 = vmatmul.bf16.gmra.mxu0 %v603
  %v701 = vpop.f32.mrf.mxu0
  %v702 = vadd.f32 %v653, %v701
  %v703 = vpop.f32.mrf.mxu0
  %v704 = vadd.f32 %v655, %v703
  %705 = vmatmul.bf16.gmra.mxu0 %v605
  %v706 = vpop.f32.mrf.mxu0
  %v707 = vadd.f32 %v658, %v706
  %v708 = vpop.f32.mrf.mxu0
  %v709 = vadd.f32 %v660, %v708
  %710 = vmatmul.bf16.gmra.mxu0 %v607
  %v711 = vpop.f32.mrf.mxu0
  %v712 = vadd.f32 %v663, %v711
  %v713 = vpop.f32.mrf.mxu0
  %v714 = vadd.f32 %v665, %v713
  %715 = vmatmul.bf16.gmra.mxu0 %v609
  %v716 = vpop.f32.mrf.mxu0
  %v717 = vadd.f32 %v668, %v716
  %v718 = vpop.f32.mrf.mxu0
  %v719 = vadd.f32 %v670, %v718
  %720 = vmatmul.bf16.gmra.mxu0 %v611
  %v721 = vpop.f32.mrf.mxu0
  %v722 = vadd.f32 %v673, %v721
  %v723 = vpop.f32.mrf.mxu0
  %v724 = vadd.f32 %v675, %v723
  %725 = vdwg.mxu0
  %v726 = vmax.f32 %v687, 0.0
  %v727 = vmax.f32 %v689, 0.0
  %v728 = vmax.f32 %v692, 0.0
  %v729 = vmax.f32 %v694, 0.0
  %v730 = vmax.f32 %v697, 0.0
  %v731 = vmax.f32 %v699, 0.0
  %v732 = vmax.f32 %v702, 0.0
  %v733 = vmax.f32 %v704, 0.0
  %v734 = vmax.f32 %v707, 0.0
  %v735 = vmax.f32 %v709, 0.0
  %v736 = vmax.f32 %v712, 0.0
  %v737 = vmax.f32 %v714, 0.0
  %v738 = vmax.f32 %v717, 0.0
  %v739 = vmax.f32 %v719, 0.0
  %v740 = vmax.f32 %v722, 0.0
  %v741 = vmax.f32 %v724, 0.0
  %v742 = vld [vmem:[%s6] sm:$0xff]
  %v743 = vld [vmem:[%s6 + $0x8] sm:$0xff]
  %v744 = vld [vmem:[%s6 + $0x10] sm:$0xff]
  %v745 = vld [vmem:[%s6 + $0x18] sm:$0xff]
  %v746 = vld [vmem:[%s6 + $0x20] sm:$0xff]
  %v747 = vld [vmem:[%s6 + $0x28] sm:$0xff]
  %v748 = vld [vmem:[%s6 + $0x30] sm:$0xff]
  %v749 = vld [vmem:[%s6 + $0x38] sm:$0xff]
  %v750 = vld [vmem:[%s6 + $0x40] sm:$0xff]
  %v751 = vld [vmem:[%s6 + $0x48] sm:$0xff]
  %v752 = vld [vmem:[%s6 + $0x50] sm:$0xff]
  %v753 = vld [vmem:[%s6 + $0x58] sm:$0xff]
  %v754 = vld [vmem:[%s6 + $0x60] sm:$0xff]
  %v755 = vld [vmem:[%s6 + $0x68] sm:$0xff]
  %v756 = vld [vmem:[%s6 + $0x70] sm:$0xff]
  %v757 = vld [vmem:[%s6 + $0x78] sm:$0xff]
  %759 = vset.pattern.permute.xlu0 0
  %760 = vperm.xlu0 %759, %v742
  %v761 = vpop.permute.xlu0 %760
  %764 = vset.pattern.permute.xlu0 0
  %765 = vperm.xlu0 %764, %v743
  %v766 = vpop.permute.xlu0 %765
  %769 = vset.pattern.permute.xlu0 0
  %770 = vperm.xlu0 %769, %v744
  %v771 = vpop.permute.xlu0 %770
  %774 = vset.pattern.permute.xlu0 0
  %775 = vperm.xlu0 %774, %v745
  %v776 = vpop.permute.xlu0 %775
  %779 = vset.pattern.permute.xlu0 0
  %780 = vperm.xlu0 %779, %v746
  %v781 = vpop.permute.xlu0 %780
  %784 = vset.pattern.permute.xlu0 0
  %785 = vperm.xlu0 %784, %v747
  %v786 = vpop.permute.xlu0 %785
  %789 = vset.pattern.permute.xlu0 0
  %790 = vperm.xlu0 %789, %v748
  %v791 = vpop.permute.xlu0 %790
  %794 = vset.pattern.permute.xlu0 0
  %795 = vperm.xlu0 %794, %v749
  %v796 = vpop.permute.xlu0 %795
  %799 = vset.pattern.permute.xlu0 0
  %800 = vperm.xlu0 %799, %v750
  %v801 = vpop.permute.xlu0 %800
  %804 = vset.pattern.permute.xlu0 0
  %805 = vperm.xlu0 %804, %v751
  %v806 = vpop.permute.xlu0 %805
  %809 = vset.pattern.permute.xlu0 0
  %810 = vperm.xlu0 %809, %v752
  %v811 = vpop.permute.xlu0 %810
  %814 = vset.pattern.permute.xlu0 0
  %815 = vperm.xlu0 %814, %v753
  %v816 = vpop.permute.xlu0 %815
  %819 = vset.pattern.permute.xlu0 0
  %820 = vperm.xlu0 %819, %v754
  %v821 = vpop.permute.xlu0 %820
  %824 = vset.pattern.permute.xlu0 0
  %825 = vperm.xlu0 %824, %v755
  %v826 = vpop.permute.xlu0 %825
  %829 = vset.pattern.permute.xlu0 0
  %830 = vperm.xlu0 %829, %v756
  %v831 = vpop.permute.xlu0 %830
  %834 = vset.pattern.permute.xlu0 0
  %835 = vperm.xlu0 %834, %v757
  %v836 = vpop.permute.xlu0 %835
  %v838 = vmul.f32 %v761, %v726
  %v839 = vmul.f32 %v766, %v727
  %v840 = vmul.f32 %v771, %v728
  %v841 = vmul.f32 %v776, %v729
  %v842 = vmul.f32 %v781, %v730
  %v843 = vmul.f32 %v786, %v731
  %v844 = vmul.f32 %v791, %v732
  %v845 = vmul.f32 %v796, %v733
  %v846 = vmul.f32 %v801, %v734
  %v847 = vmul.f32 %v806, %v735
  %v848 = vmul.f32 %v811, %v736
  %v849 = vmul.f32 %v816, %v737
  %v850 = vmul.f32 %v821, %v738
  %v851 = vmul.f32 %v826, %v739
  %v852 = vmul.f32 %v831, %v740
  %v853 = vmul.f32 %v836, %v741
  %v854 = vadd.f32 %v838, %v839
  %v855 = vadd.f32 %v854, %v840
  %v856 = vadd.f32 %v855, %v841
  %v857 = vadd.f32 %v856, %v842
  %v858 = vadd.f32 %v857, %v843
  %v859 = vadd.f32 %v858, %v844
  %v860 = vadd.f32 %v859, %v845
  %v861 = vadd.f32 %v860, %v846
  %v862 = vadd.f32 %v861, %v847
  %v863 = vadd.f32 %v862, %v848
  %v864 = vadd.f32 %v863, %v849
  %v865 = vadd.f32 %v864, %v850
  %v866 = vadd.f32 %v865, %v851
  %v867 = vadd.f32 %v866, %v852
  %v868 = vadd.f32 %v867, %v853
  %v869 = vrot.slane %v868, 4
  %v870 = vadd.f32 %v868, %v869
  %v871 = vrot.slane %v870, 2
  %v872 = vadd.f32 %v870, %v871
  %v873 = vrot.slane %v872, 1
  %v874 = vadd.f32 %v872, %v873
  %s875 = sld [smem:[#allocation2]]
  %v876 = vstv %s875
  %v877 = vadd.f32 %v874, %v876
  %878 = vst [vmem:[%s8] sm:$0x1] %v877
  // Predicated region
  $region34: #{simple_conv_net_forward.1} parent=0 // pred_check
    _
  $region35: #{simple_conv_net_forward.1} parent=0 // pred_check_branch
    %880 = sbr.rel (0) target = $region37
  $region36: #{simple_conv_net_forward.1} parent=0 // pred_region
    _
  $region37: #{simple_conv_net_forward.1} parent=0 // pred_fallthru
    _
  // Predicated region
  $region38: #{simple_conv_net_forward.1} parent=0 // pred_check
    _
  $region39: #{simple_conv_net_forward.1} parent=0 // pred_check_branch
    %882 = sbr.rel (0) target = $region41
  $region40: #{simple_conv_net_forward.1} parent=0 // pred_region
    _
  $region41: #{simple_conv_net_forward.1} parent=0 // pred_fallthru
    _

</llo_original>
